<compile_context>
chip_gen: v5e
topology: v5e:2x2
jax: 0.10.0
libtpu: 0.0.40
codegen_flags: <defaults>
</compile_context>

<pallas_src>
import functools
import math

import jax
import jax.numpy as jnp
from jax.experimental import pallas as pl
from jax.experimental.pallas import tpu as pltpu

NEG_SLOPE = 0.01  # PyTorch nn.LeakyReLU default


def _round_up(a, b):
    return (a + b - 1) // b * b


def _leaky_relu(x):
    return jnp.where(x > 0, x, NEG_SLOPE * x)


# --------------------------------------------------------------------------
# Kernels: everything fused in one pass — three matmuls on the MXU (bf16 or
# f32 operands, f32 accumulation) and the elementwise ops on the VPU in f32.
# --------------------------------------------------------------------------
def _kernel_shortcut(x_ref, w0_ref, b0_ref, w1_ref, b1_ref, ws_ref, o_ref):
    x = x_ref[...]                                    # (tm, IN) input dtype (f32)
    a0 = _leaky_relu(x).astype(w0_ref.dtype)          # cast to MXU dtype after VPU op
    net = jnp.dot(a0, w0_ref[...], preferred_element_type=jnp.float32) + b0_ref[...]
    a1 = _leaky_relu(net).astype(w1_ref.dtype)
    dx = jnp.dot(a1, w1_ref[...], preferred_element_type=jnp.float32) + b1_ref[...]
    x_s = jnp.dot(x.astype(ws_ref.dtype), ws_ref[...],
                  preferred_element_type=jnp.float32)
    o_ref[...] = (x_s + dx).astype(o_ref.dtype)


def _kernel_identity(x_ref, w0_ref, b0_ref, w1_ref, b1_ref, o_ref):
    # size_in == size_out: shortcut is identity (kept in f32, exact).
    x = x_ref[...]
    a0 = _leaky_relu(x).astype(w0_ref.dtype)
    net = jnp.dot(a0, w0_ref[...], preferred_element_type=jnp.float32) + b0_ref[...]
    a1 = _leaky_relu(net).astype(w1_ref.dtype)
    dx = jnp.dot(a1, w1_ref[...], preferred_element_type=jnp.float32) + b1_ref[...]
    o_ref[...] = (x.astype(jnp.float32) + dx).astype(o_ref.dtype)


# --------------------------------------------------------------------------
# One-time parameter preparation (hoisted out of the per-call hot path):
# transpose to (in, out), cast to the matmul compute dtype, zero-pad feature
# dims to multiples of 128 so all MXU K/N dims and stores are lane-dense.
# Zero padding does not change the math (padded activations/bias are exactly
# zero and padded output columns are sliced off).
# --------------------------------------------------------------------------
def prepare_params(params, compute_dtype=jnp.bfloat16):
    w0 = jnp.asarray(params["w0"])       # (size_h, size_in)  fc_0.weight
    b0 = jnp.asarray(params["b0"])       # (size_h,)          fc_0.bias
    w1 = jnp.asarray(params["w1"])       # (size_out, size_h) fc_1.weight
    b1 = jnp.asarray(params["b1"])       # (size_out,)        fc_1.bias
    ws = params.get("ws", None)          # (size_out, size_in) or None

    size_h, size_in = w0.shape
    size_out = w1.shape[0]
    IN = _round_up(size_in, 128)
    H = _round_up(size_h, 128)
    OUT = _round_up(size_out, 128)

    w0_p = jnp.zeros((IN, H), compute_dtype).at[:size_in, :size_h].set(
        w0.T.astype(compute_dtype))
    b0_p = jnp.zeros((1, H), jnp.float32).at[0, :size_h].set(b0.astype(jnp.float32))
    w1_p = jnp.zeros((H, OUT), compute_dtype).at[:size_h, :size_out].set(
        w1.T.astype(compute_dtype))
    b1_p = jnp.zeros((1, OUT), jnp.float32).at[0, :size_out].set(b1.astype(jnp.float32))

    prepped = {"w0": w0_p, "b0": b0_p, "w1": w1_p, "b1": b1_p}
    if ws is not None:
        ws = jnp.asarray(ws)
        prepped["ws"] = jnp.zeros((IN, OUT), compute_dtype).at[:size_in, :size_out].set(
            ws.T.astype(compute_dtype))
    else:
        assert size_in == size_out, "identity shortcut requires size_in == size_out"
        prepped["ws"] = None
    return prepped, size_out


# --------------------------------------------------------------------------
# Forward
# --------------------------------------------------------------------------
@functools.partial(jax.jit, static_argnames=("tm", "size_out"))
def _forward(x, w0, b0, w1, b1, ws, *, tm, size_out):
    out_dtype = x.dtype
    lead = x.shape[:-1]
    size_in = x.shape[-1]
    N = math.prod(lead) if lead else 1

    IN, H = w0.shape
    OUT = w1.shape[1]

    x2 = x.reshape(N, size_in)

    # Row tile: large by default (MXU M-occupancy + fewer grid steps), clamped
    # to the (8-aligned) row count, with row/feature zero-padding so any shape
    # works.  Padded rows produce garbage that is sliced off below.
    tm_eff = min(tm, _round_up(max(N, 1), 8))
    N_pad = _round_up(N, tm_eff)
    pad_rows = N_pad - N
    pad_cols = IN - size_in
    if pad_rows or pad_cols:
        x2 = jnp.pad(x2, ((0, pad_rows), (0, pad_cols)))

    grid = (N_pad // tm_eff,)

    x_spec = pl.BlockSpec((tm_eff, IN), lambda i: (i, 0))
    out_spec = pl.BlockSpec((tm_eff, OUT), lambda i: (i, 0))
    const = lambda shape: pl.BlockSpec(shape, lambda i: (0, 0))  # weights resident

    # Rough VMEM budget: double-buffered x/out tiles + (double-buffered)
    # resident weights/biases + f32 intermediates.  Only raise the scoped
    # limit when needed; cap at 64 MiB so it remains valid on v7x.
    itemsize = x.dtype.itemsize
    wbytes = sum(a.size * jnp.dtype(a.dtype).itemsize
                 for a in (w0, b0, w1, b1) + ((ws,) if ws is not None else ()))
    est = (2 * tm_eff * IN * itemsize + 2 * tm_eff * OUT * itemsize
           + 2 * wbytes + 6 * tm_eff * max(H, OUT) * 4)
    vmem_limit = int(min(est * 5 // 4, 64 * 2**20)) if est > 12 * 2**20 else None
    # TODO(synk): for very large hidden sizes on v7x (weights > ~40 MiB) a K/N
    # grid tiling with an f32 accumulator would be needed instead of fully
    # resident weights.

    cparams = pltpu.CompilerParams(
        dimension_semantics=("parallel",),  # shards across the 2 TCs on v7x
        vmem_limit_bytes=vmem_limit,
    )

    if ws is not None:
        kernel = _kernel_shortcut
        in_specs = [x_spec, const(w0.shape), const(b0.shape),
                    const(w1.shape), const(b1.shape), const(ws.shape)]
        args = (x2, w0, b0, w1, b1, ws)
    else:
        kernel = _kernel_identity
        in_specs = [x_spec, const(w0.shape), const(b0.shape),
                    const(w1.shape), const(b1.shape)]
        args = (x2, w0, b0, w1, b1)

    out = pl.pallas_call(
        kernel,
        out_shape=jax.ShapeDtypeStruct((N_pad, OUT), out_dtype),
        grid_spec=pltpu.PrefetchScalarGridSpec(
            num_scalar_prefetch=0,
            grid=grid,
            in_specs=in_specs,
            out_specs=out_spec,
        ),
        compiler_params=cparams,
    )(*args)

    out = out[:N, :size_out]
    return out.reshape(*lead, size_out)


def resnet_block_fc(x, prepped, size_out, tm=256):
    """Apply ResnetBlockFC.  `prepped, size_out = prepare_params(params)`."""
    return _forward(x, prepped["w0"], prepped["b0"], prepped["w1"], prepped["b1"],
                    prepped["ws"], tm=tm, size_out=size_out)


# --------------------------------------------------------------------------
# Synthetic init (PyTorch parameter shapes) + pure-JAX reference
# --------------------------------------------------------------------------
def init_params(key, size_in, size_out=None, size_h=None, dtype=jnp.float32):
    if size_out is None:
        size_out = size_in
    if size_h is None:
        size_h = min(size_in, size_out)
    k0, k1, k2, k3 = jax.random.split(key, 4)
    params = {
        "w0": 0.1 * jax.random.normal(k0, (size_h, size_in), dtype),
        "b0": 0.1 * jax.random.normal(k1, (size_h,), dtype),
        "w1": jnp.zeros((size_out, size_h), dtype),   # nn.init.zeros_(fc_1.weight)
        "b1": 0.1 * jax.random.normal(k2, (size_out,), dtype),
    }
    if size_in != size_out:
        params["ws"] = 0.1 * jax.random.normal(k3, (size_out, size_in), dtype)
    else:
        params["ws"] = None
    return params


def _reference(x, params):
    def lrelu(v):
        return jnp.where(v > 0, v, NEG_SLOPE * v)
    net = lrelu(x) @ params["w0"].T + params["b0"]
    dx = lrelu(net) @ params["w1"].T + params["b1"]
    x_s = x @ params["ws"].T if params["ws"] is not None else x
    return x_s + dx


if __name__ == "__main__":
    key = jax.random.PRNGKey(0)
    kx, kp = jax.random.split(key)

    batch, seq = 2, 8
    size_in, size_out = 32, 64          # projected-shortcut path; size_h = 32
    x = jax.random.normal(kx, (batch, seq, size_in), jnp.float32)

    params = init_params(kp, size_in, size_out)
    ref = _reference(x, params)

    # Default bf16 matmul operands (f32 accumulation) — relaxed tolerance.
    prepped_bf16, so = prepare_params(params, compute_dtype=jnp.bfloat16)
    out_bf16 = jax.block_until_ready(resnet_block_fc(x, prepped_bf16, so))
    assert out_bf16.shape == (batch, seq, size_out), out_bf16.shape
    assert jnp.allclose(out_bf16, ref, atol=5e-2, rtol=5e-2), "bf16 mismatch vs reference"

    # f32 compute path — strict check of the fused structure.
    prepped_f32, so32 = prepare_params(params, compute_dtype=jnp.float32)
    out_f32 = jax.block_until_ready(resnet_block_fc(x, prepped_f32, so32))
    assert jnp.allclose(out_f32, ref, atol=1e-5, rtol=1e-5), "f32 mismatch vs reference"

    # Identity-shortcut path (size_in == size_out), with non-zero fc_1 weights
    # to exercise the full dx path.
    params_id = init_params(kp, size_in, size_in)
    params_id["w1"] = 0.1 * jax.random.normal(jax.random.PRNGKey(7),
                                              (size_in, size_in), jnp.float32)
    ref_id = _reference(x, params_id)
    prepped_id, so_id = prepare_params(params_id, compute_dtype=jnp.float32)
    out_id = jax.block_until_ready(resnet_block_fc(x, prepped_id, so_id))
    assert out_id.shape == (batch, seq, size_in), out_id.shape
    assert jnp.allclose(out_id, ref_id, atol=1e-5, rtol=1e-5), "identity mismatch"

    print("KERNEL_OK")
</pallas_src>

<mosaic_0001>
module attributes {stable_mosaic.version = 11 : i64} {
  func.func @_kernel_shortcut(%arg0: i32, %arg1: memref<16x128xf32, #tpu.memory_space<vmem>>, %arg2: memref<128x128xbf16, #tpu.memory_space<vmem>>, %arg3: memref<1x128xf32, #tpu.memory_space<vmem>>, %arg4: memref<128x128xbf16, #tpu.memory_space<vmem>>, %arg5: memref<1x128xf32, #tpu.memory_space<vmem>>, %arg6: memref<128x128xbf16, #tpu.memory_space<vmem>>, %arg7: memref<16x128xf32, #tpu.memory_space<vmem>>) attributes {dimension_semantics = [#tpu.dimension_semantics<parallel>], iteration_bounds = array<i64: 1>, scalar_prefetch = 0 : i64, scratch_operands = 0 : i64, tpu.core_type = #tpu.core_type<tc>, window_params = [{transform_indices = @transform_0, window_bounds = array<i64: 16, 128>}, {pipeline_mode = #tpu.pipeline_mode<synchronous>, transform_indices = @transform_1, window_bounds = array<i64: 128, 128>}, {pipeline_mode = #tpu.pipeline_mode<synchronous>, transform_indices = @transform_2, window_bounds = array<i64: 1, 128>}, {pipeline_mode = #tpu.pipeline_mode<synchronous>, transform_indices = @transform_3, window_bounds = array<i64: 128, 128>}, {pipeline_mode = #tpu.pipeline_mode<synchronous>, transform_indices = @transform_4, window_bounds = array<i64: 1, 128>}, {pipeline_mode = #tpu.pipeline_mode<synchronous>, transform_indices = @transform_5, window_bounds = array<i64: 128, 128>}, {transform_indices = @transform_6, window_bounds = array<i64: 16, 128>}]} {
    %c0 = arith.constant 0 : index
    %c0_0 = arith.constant 0 : index
    %0 = vector.load %arg1[%c0, %c0_0] : memref<16x128xf32, #tpu.memory_space<vmem>>, vector<16x128xf32>
    %cst = arith.constant 0.000000e+00 : f32
    %1 = vector.broadcast %cst : f32 to vector<16x128xf32>
    %2 = arith.cmpf ogt, %0, %1 : vector<16x128xf32>
    %cst_1 = arith.constant 0.00999999977 : f32
    %3 = vector.broadcast %cst_1 : f32 to vector<16x128xf32>
    %4 = arith.mulf %3, %0 : vector<16x128xf32>
    %5 = arith.select %2, %0, %4 : vector<16x128xi1>, vector<16x128xf32>
    %6 = arith.truncf %5 : vector<16x128xf32> to vector<16x128xbf16>
    %c0_2 = arith.constant 0 : index
    %c0_3 = arith.constant 0 : index
    %7 = vector.load %arg2[%c0_2, %c0_3] : memref<128x128xbf16, #tpu.memory_space<vmem>>, vector<128x128xbf16>
    %cst_4 = arith.constant dense<0.000000e+00> : vector<16x128xf32>
    %8 = tpu.matmul %6, %7, %cst_4 {dimension_numbers = #tpu.dot_dimension_numbers<[1], [0], [0], [1], [0, 0, 1, 1], [], []>} : vector<16x128xbf16>, vector<128x128xbf16>, vector<16x128xf32> -> vector<16x128xf32>
    %c0_5 = arith.constant 0 : index
    %c0_6 = arith.constant 0 : index
    %9 = vector.load %arg3[%c0_5, %c0_6] : memref<1x128xf32, #tpu.memory_space<vmem>>, vector<1x128xf32>
    %10 = vector.broadcast %9 : vector<1x128xf32> to vector<16x128xf32>
    %11 = arith.addf %8, %10 : vector<16x128xf32>
    %cst_7 = arith.constant 0.000000e+00 : f32
    %12 = vector.broadcast %cst_7 : f32 to vector<16x128xf32>
    %13 = arith.cmpf ogt, %11, %12 : vector<16x128xf32>
    %cst_8 = arith.constant 0.00999999977 : f32
    %14 = vector.broadcast %cst_8 : f32 to vector<16x128xf32>
    %15 = arith.mulf %14, %11 : vector<16x128xf32>
    %16 = arith.select %13, %11, %15 : vector<16x128xi1>, vector<16x128xf32>
    %17 = arith.truncf %16 : vector<16x128xf32> to vector<16x128xbf16>
    %c0_9 = arith.constant 0 : index
    %c0_10 = arith.constant 0 : index
    %18 = vector.load %arg4[%c0_9, %c0_10] : memref<128x128xbf16, #tpu.memory_space<vmem>>, vector<128x128xbf16>
    %cst_11 = arith.constant dense<0.000000e+00> : vector<16x128xf32>
    %19 = tpu.matmul %17, %18, %cst_11 {dimension_numbers = #tpu.dot_dimension_numbers<[1], [0], [0], [1], [0, 0, 1, 1], [], []>} : vector<16x128xbf16>, vector<128x128xbf16>, vector<16x128xf32> -> vector<16x128xf32>
    %c0_12 = arith.constant 0 : index
    %c0_13 = arith.constant 0 : index
    %20 = vector.load %arg5[%c0_12, %c0_13] : memref<1x128xf32, #tpu.memory_space<vmem>>, vector<1x128xf32>
    %21 = vector.broadcast %20 : vector<1x128xf32> to vector<16x128xf32>
    %22 = arith.addf %19, %21 : vector<16x128xf32>
    %23 = arith.truncf %0 : vector<16x128xf32> to vector<16x128xbf16>
    %c0_14 = arith.constant 0 : index
    %c0_15 = arith.constant 0 : index
    %24 = vector.load %arg6[%c0_14, %c0_15] : memref<128x128xbf16, #tpu.memory_space<vmem>>, vector<128x128xbf16>
    %cst_16 = arith.constant dense<0.000000e+00> : vector<16x128xf32>
    %25 = tpu.matmul %23, %24, %cst_16 {dimension_numbers = #tpu.dot_dimension_numbers<[1], [0], [0], [1], [0, 0, 1, 1], [], []>} : vector<16x128xbf16>, vector<128x128xbf16>, vector<16x128xf32> -> vector<16x128xf32>
    %26 = arith.addf %25, %22 : vector<16x128xf32>
    %c0_17 = arith.constant 0 : index
    %c0_18 = arith.constant 0 : index
    %27 = vector.load %arg7[%c0_17, %c0_18] : memref<16x128xf32, #tpu.memory_space<vmem>>, vector<16x128xf32>
    tpu.vector_store %arg7[%c0_17, %c0_18], %26 {strides = array<i32>} : memref<16x128xf32, #tpu.memory_space<vmem>>, vector<16x128xf32>,
    return
  }
  func.func @transform_0(%arg0: i32) -> (i32, i32) {
    %c0_i32 = arith.constant 0 : i32
    %c0_i32_0 = arith.constant 0 : i32
    return %arg0, %c0_i32 : i32, i32
  }
  func.func @transform_1(%arg0: i32) -> (i32, i32) {
    %c0_i32 = arith.constant 0 : i32
    %c0_i32_0 = arith.constant 0 : i32
    %c0_i32_1 = arith.constant 0 : i32
    return %c0_i32, %c0_i32_0 : i32, i32
  }
  func.func @transform_2(%arg0: i32) -> (i32, i32) {
    %c0_i32 = arith.constant 0 : i32
    %c0_i32_0 = arith.constant 0 : i32
    %c0_i32_1 = arith.constant 0 : i32
    return %c0_i32, %c0_i32_0 : i32, i32
  }
  func.func @transform_3(%arg0: i32) -> (i32, i32) {
    %c0_i32 = arith.constant 0 : i32
    %c0_i32_0 = arith.constant 0 : i32
    %c0_i32_1 = arith.constant 0 : i32
    return %c0_i32, %c0_i32_0 : i32, i32
  }
  func.func @transform_4(%arg0: i32) -> (i32, i32) {
    %c0_i32 = arith.constant 0 : i32
    %c0_i32_0 = arith.constant 0 : i32
    %c0_i32_1 = arith.constant 0 : i32
    return %c0_i32, %c0_i32_0 : i32, i32
  }
  func.func @transform_5(%arg0: i32) -> (i32, i32) {
    %c0_i32 = arith.constant 0 : i32
    %c0_i32_0 = arith.constant 0 : i32
    %c0_i32_1 = arith.constant 0 : i32
    return %c0_i32, %c0_i32_0 : i32, i32
  }
  func.func @transform_6(%arg0: i32) -> (i32, i32) {
    %c0_i32 = arith.constant 0 : i32
    %c0_i32_0 = arith.constant 0 : i32
    return %arg0, %c0_i32 : i32, i32
  }
}

</mosaic_0001>

<llo_original>
// kernel: _forward.1
$region0: #{_forward.1}
  #allocation0 [shape = 'u32[]', space=smem, size = 0x4, offset = 0x4, fixed_abs, tag = 'smem constant byte address 0x4 - core index']
  #allocation1 [shape = 'u32[72,128]{1,0:T(1,128)}', space=vmem, size = 0x9000, scoped, tag = 'internal scratch']
  %s0 = inlined_call_operand.vmem [shape: f32[16,128], index: 0, kind: input, shape index: {}]
  %s1 = inlined_call_operand.hbm [shape: bf16[128,128], index: 1, kind: input, shape index: {}]
  %s2 = inlined_call_operand.vmem [shape: f32[1,128], index: 2, kind: input, shape index: {}]
  %s3 = inlined_call_operand.hbm [shape: bf16[128,128], index: 3, kind: input, shape index: {}]
  %s4 = inlined_call_operand.vmem [shape: f32[1,128], index: 4, kind: input, shape index: {}]
  %s5 = inlined_call_operand.hbm [shape: bf16[128,128], index: 5, kind: input, shape index: {}]
  %s6 = inlined_call_operand.vmem [shape: f32[16,128], index: 6, kind: output, shape index: {}]
  %s7 = sld [smem:[#allocation0]]
  $region46: #{_forward.1} parent=0
    _
  %s9 = ssub.s32 1, %s7
  %s10 = scalar_select 0, %s9, %s7
  $region1: #{_forward.1} parent=0
    #allocation2 [shape = 'u8[32768]{0}', space=vmem, size = 0x8000, scoped, tag = 'input window, operand 1, single buffered']
    #allocation3 [shape = 's32[1]{0}', space=sflag, size = 0x4, scoped, tag = 'scoped memory for _forward.1']
    #allocation4 [shape = 'u8[32768]{0}', space=vmem, size = 0x8000, scoped, tag = 'input window, operand 3, single buffered']
    #allocation5 [shape = 's32[1]{0}', space=sflag, size = 0x4, scoped, tag = 'scoped memory for _forward.1']
    #allocation6 [shape = 'u8[32768]{0}', space=vmem, size = 0x8000, scoped, tag = 'input window, operand 5, single buffered']
    %11 = vsyncpa [#allocation3], 0
    %12 = vsyncpa [#allocation5], 0
    // Predicated region
    $region2: #{_forward.1} parent=1 // pred_check
      _
    $region3: #{_forward.1} parent=1 // pred_check_branch
      %14 = sbr.rel (0) target = $region5
    $region4: #{_forward.1} parent=1 // pred_region
      _
    $region5: #{_forward.1} parent=1 // pred_fallthru
      _
    // Predicated region
    $region6: #{_forward.1} parent=1 // pred_check
      _
    $region7: #{_forward.1} parent=1 // pred_check_branch
      %16 = sbr.rel (0) target = $region9
    $region8: #{_forward.1} parent=1 // pred_region
      %18 = vsyncadd [#allocation3], 0
      %s19 = sshll.u32 %s1, 4
      %s20 = int_to_ptr.hbm [resolvable:$true] %s19
      %s21 = sshll.u32 [#allocation2], 4
      %s22 = int_to_ptr.vmem [resolvable:$true] %s21
      %27 = dma.hbm_to_vmem [thread:$0]  %s20, 1024, %s22, [#allocation3], 64, 64, 4
    $region9: #{_forward.1} parent=1 // pred_fallthru
      _
    // Predicated region
    $region10: #{_forward.1} parent=1 // pred_check
      _
    $region11: #{_forward.1} parent=1 // pred_check_branch
      %29 = sbr.rel (0) target = $region13
    $region12: #{_forward.1} parent=1 // pred_region
      _
    $region13: #{_forward.1} parent=1 // pred_fallthru
      _
    // Predicated region
    $region14: #{_forward.1} parent=1 // pred_check
      _
    $region15: #{_forward.1} parent=1 // pred_check_branch
      %31 = sbr.rel (0) target = $region17
    $region16: #{_forward.1} parent=1 // pred_region
      %33 = vsyncadd [#allocation5], 0
      %s34 = sshll.u32 %s3, 4
      %s35 = int_to_ptr.hbm [resolvable:$true] %s34
      %s36 = sshll.u32 [#allocation4], 4
      %s37 = int_to_ptr.vmem [resolvable:$true] %s36
      %42 = dma.hbm_to_vmem [thread:$0]  %s35, 1024, %s37, [#allocation5], 64, 64, 4
    $region17: #{_forward.1} parent=1 // pred_fallthru
      _
    // Predicated region
    $region18: #{_forward.1} parent=1 // pred_check
      _
    $region19: #{_forward.1} parent=1 // pred_check_branch
      %44 = sbr.rel (0) target = $region21
    $region20: #{_forward.1} parent=1 // pred_region
      _
    $region21: #{_forward.1} parent=1 // pred_fallthru
      _
    // Predicated region
    $region22: #{_forward.1} parent=1 // pred_check
      _
    $region23: #{_forward.1} parent=1 // pred_check_branch
      %46 = sbr.rel (0) target = $region25
    $region24: #{_forward.1} parent=1 // pred_region
      %48 = vsyncadd [#allocation5], 0
      %s49 = sshll.u32 %s5, 4
      %s50 = int_to_ptr.hbm [resolvable:$true] %s49
      %s51 = sshll.u32 [#allocation6], 4
      %s52 = int_to_ptr.vmem [resolvable:$true] %s51
      %57 = dma.hbm_to_vmem [thread:$0]  %s50, 1024, %s52, [#allocation5], 64, 64, 4
    $region25: #{_forward.1} parent=1 // pred_fallthru
      _
    // Predicated region
    $region26: #{_forward.1} parent=1 // pred_check
      _
    $region27: #{_forward.1} parent=1 // pred_check_branch
      %59 = sbr.rel (0) target = $region29
    $region28: #{_forward.1} parent=1 // pred_region
      %61 = dma.done [#allocation3], 1024
    $region29: #{_forward.1} parent=1 // pred_fallthru
      _
    // Predicated region
    $region30: #{_forward.1} parent=1 // pred_check
      _
    $region31: #{_forward.1} parent=1 // pred_check_branch
      %63 = sbr.rel (0) target = $region33
    $region32: #{_forward.1} parent=1 // pred_region
      %65 = dma.done [#allocation5], 1024
    $region33: #{_forward.1} parent=1 // pred_fallthru
      _
    // Predicated region
    $region34: #{_forward.1} parent=1 // pred_check
      _
    $region35: #{_forward.1} parent=1 // pred_check_branch
      %67 = sbr.rel (0) target = $region37
    $region36: #{_forward.1} parent=1 // pred_region
      %69 = dma.done [#allocation5], 1024
    $region37: #{_forward.1} parent=1 // pred_fallthru
      _
    %v70 = vld [vmem:[%s0] sm:$0xff]
    %v71 = vld [vmem:[%s0 + $0x8] sm:$0xff]
    %vm72 = vcmp.gt.f32.partialorder %v70, 0.0
    %vm73 = vcmp.gt.f32.partialorder %v71, 0.0
    %v74 = vmul.f32 %v70, 0.01
    %v75 = vmul.f32 %v71, 0.01
    %v76 = vsel %vm72, %v70, %v74
    %v77 = vsel %vm73, %v71, %v75
    %v78 = vpack.c.bf16 %v77, %v76
    %v79 = vld [vmem:[#allocation2] sm:$0xf]
    %v80 = vld [vmem:[#allocation2 + $0x4] sm:$0xf]
    %v81 = vld [vmem:[#allocation2 + $0x8] sm:$0xf]
    %v82 = vld [vmem:[#allocation2 + $0xc] sm:$0xf]
    %v83 = vld [vmem:[#allocation2 + $0x10] sm:$0xf]
    %v84 = vld [vmem:[#allocation2 + $0x14] sm:$0xf]
    %v85 = vld [vmem:[#allocation2 + $0x18] sm:$0xf]
    %v86 = vld [vmem:[#allocation2 + $0x1c] sm:$0xf]
    %v87 = vld [vmem:[#allocation2 + $0x20] sm:$0xf]
    %v88 = vld [vmem:[#allocation2 + $0x24] sm:$0xf]
    %v89 = vld [vmem:[#allocation2 + $0x28] sm:$0xf]
    %v90 = vld [vmem:[#allocation2 + $0x2c] sm:$0xf]
    %v91 = vld [vmem:[#allocation2 + $0x30] sm:$0xf]
    %v92 = vld [vmem:[#allocation2 + $0x34] sm:$0xf]
    %v93 = vld [vmem:[#allocation2 + $0x38] sm:$0xf]
    %v94 = vld [vmem:[#allocation2 + $0x3c] sm:$0xf]
    %v95 = vld [vmem:[%s2] sm:$0x1]
    %v97 = vperm.slane %v95, 0
    %v115 = vunpack.c.l.b16 %v79
    %v116 = vunpack.c.l.b16 %v80
    %v117 = vunpack.c.l.b16 %v81
    %v118 = vunpack.c.l.b16 %v82
    %v119 = vunpack.c.l.b16 %v83
    %v120 = vunpack.c.l.b16 %v84
    %v121 = vunpack.c.l.b16 %v85
    %v122 = vunpack.c.l.b16 %v86
    %v123 = vunpack.c.l.b16 %v87
    %v124 = vunpack.c.l.b16 %v88
    %v125 = vunpack.c.l.b16 %v89
    %v126 = vunpack.c.l.b16 %v90
    %v127 = vunpack.c.l.b16 %v91
    %v128 = vunpack.c.l.b16 %v92
    %v129 = vunpack.c.l.b16 %v93
    %v130 = vunpack.c.l.b16 %v94
    %v131 = vpack.c.b16 %v116, %v115
    %v132 = vpack.c.b16 %v118, %v117
    %v133 = vpack.c.b16 %v120, %v119
    %v134 = vpack.c.b16 %v122, %v121
    %v135 = vpack.c.b16 %v124, %v123
    %v136 = vpack.c.b16 %v126, %v125
    %v137 = vpack.c.b16 %v128, %v127
    %v138 = vpack.c.b16 %v130, %v129
    %147 = vmatpush.bf16.msra.mxu0 %v138
    %148 = vmatpush.bf16.msra.mxu0 %v137
    %149 = vmatpush.bf16.msra.mxu0 %v136
    %150 = vmatpush.bf16.msra.mxu0 %v135
    %151 = vmatpush.bf16.msra.mxu0 %v134
    %152 = vmatpush.bf16.msra.mxu0 %v133
    %153 = vmatpush.bf16.msra.mxu0 %v132
    %154 = vmatpush.bf16.msra.mxu0 %v131
    %155 = vmatmul.bf16.gmra.mxu0 %v78
    %v156 = vpop.f32.mrf.mxu0
    %v157 = vadd.f32 %v97, %v156
    %v158 = vpop.f32.mrf.mxu0
    %v159 = vadd.f32 %v97, %v158
    %160 = vdwg.mxu0
    %vm161 = vcmp.gt.f32.partialorder %v157, 0.0
    %vm162 = vcmp.gt.f32.partialorder %v159, 0.0
    %v163 = vmul.f32 %v157, 0.01
    %v164 = vmul.f32 %v159, 0.01
    %v165 = vsel %vm161, %v157, %v163
    %v166 = vsel %vm162, %v159, %v164
    %v167 = vpack.c.bf16 %v166, %v165
    %v168 = vld [vmem:[#allocation4] sm:$0xf]
    %v169 = vld [vmem:[#allocation4 + $0x4] sm:$0xf]
    %v170 = vld [vmem:[#allocation4 + $0x8] sm:$0xf]
    %v171 = vld [vmem:[#allocation4 + $0xc] sm:$0xf]
    %v172 = vld [vmem:[#allocation4 + $0x10] sm:$0xf]
    %v173 = vld [vmem:[#allocation4 + $0x14] sm:$0xf]
    %v174 = vld [vmem:[#allocation4 + $0x18] sm:$0xf]
    %v175 = vld [vmem:[#allocation4 + $0x1c] sm:$0xf]
    %v176 = vld [vmem:[#allocation4 + $0x20] sm:$0xf]
    %v177 = vld [vmem:[#allocation4 + $0x24] sm:$0xf]
    %v178 = vld [vmem:[#allocation4 + $0x28] sm:$0xf]
    %v179 = vld [vmem:[#allocation4 + $0x2c] sm:$0xf]
    %v180 = vld [vmem:[#allocation4 + $0x30] sm:$0xf]
    %v181 = vld [vmem:[#allocation4 + $0x34] sm:$0xf]
    %v182 = vld [vmem:[#allocation4 + $0x38] sm:$0xf]
    %v183 = vld [vmem:[#allocation4 + $0x3c] sm:$0xf]
    %v184 = vld [vmem:[%s4] sm:$0x1]
    %v186 = vperm.slane %v184, 0
    %v204 = vunpack.c.l.b16 %v168
    %v205 = vunpack.c.l.b16 %v169
    %v206 = vunpack.c.l.b16 %v170
    %v207 = vunpack.c.l.b16 %v171
    %v208 = vunpack.c.l.b16 %v172
    %v209 = vunpack.c.l.b16 %v173
    %v210 = vunpack.c.l.b16 %v174
    %v211 = vunpack.c.l.b16 %v175
    %v212 = vunpack.c.l.b16 %v176
    %v213 = vunpack.c.l.b16 %v177
    %v214 = vunpack.c.l.b16 %v178
    %v215 = vunpack.c.l.b16 %v179
    %v216 = vunpack.c.l.b16 %v180
    %v217 = vunpack.c.l.b16 %v181
    %v218 = vunpack.c.l.b16 %v182
    %v219 = vunpack.c.l.b16 %v183
    %v220 = vpack.c.b16 %v205, %v204
    %v221 = vpack.c.b16 %v207, %v206
    %v222 = vpack.c.b16 %v209, %v208
    %v223 = vpack.c.b16 %v211, %v210
    %v224 = vpack.c.b16 %v213, %v212
    %v225 = vpack.c.b16 %v215, %v214
    %v226 = vpack.c.b16 %v217, %v216
    %v227 = vpack.c.b16 %v219, %v218
    %236 = vmatpush.bf16.msra.mxu0 %v227
    %237 = vmatpush.bf16.msra.mxu0 %v226
    %238 = vmatpush.bf16.msra.mxu0 %v225
    %239 = vmatpush.bf16.msra.mxu0 %v224
    %240 = vmatpush.bf16.msra.mxu0 %v223
    %241 = vmatpush.bf16.msra.mxu0 %v222
    %242 = vmatpush.bf16.msra.mxu0 %v221
    %243 = vmatpush.bf16.msra.mxu0 %v220
    %244 = vmatmul.bf16.gmra.mxu0 %v167
    %v245 = vpop.f32.mrf.mxu0
    %v246 = vadd.f32 %v186, %v245
    %v247 = vpop.f32.mrf.mxu0
    %v248 = vadd.f32 %v186, %v247
    %249 = vdwg.mxu0
    %v250 = vpack.c.bf16 %v71, %v70
    %v251 = vld [vmem:[#allocation6] sm:$0xf]
    %v252 = vld [vmem:[#allocation6 + $0x4] sm:$0xf]
    %v253 = vld [vmem:[#allocation6 + $0x8] sm:$0xf]
    %v254 = vld [vmem:[#allocation6 + $0xc] sm:$0xf]
    %v255 = vld [vmem:[#allocation6 + $0x10] sm:$0xf]
    %v256 = vld [vmem:[#allocation6 + $0x14] sm:$0xf]
    %v257 = vld [vmem:[#allocation6 + $0x18] sm:$0xf]
    %v258 = vld [vmem:[#allocation6 + $0x1c] sm:$0xf]
    %v259 = vld [vmem:[#allocation6 + $0x20] sm:$0xf]
    %v260 = vld [vmem:[#allocation6 + $0x24] sm:$0xf]
    %v261 = vld [vmem:[#allocation6 + $0x28] sm:$0xf]
    %v262 = vld [vmem:[#allocation6 + $0x2c] sm:$0xf]
    %v263 = vld [vmem:[#allocation6 + $0x30] sm:$0xf]
    %v264 = vld [vmem:[#allocation6 + $0x34] sm:$0xf]
    %v265 = vld [vmem:[#allocation6 + $0x38] sm:$0xf]
    %v266 = vld [vmem:[#allocation6 + $0x3c] sm:$0xf]
    %v283 = vunpack.c.l.b16 %v251
    %v284 = vunpack.c.l.b16 %v252
    %v285 = vunpack.c.l.b16 %v253
    %v286 = vunpack.c.l.b16 %v254
    %v287 = vunpack.c.l.b16 %v255
    %v288 = vunpack.c.l.b16 %v256
    %v289 = vunpack.c.l.b16 %v257
    %v290 = vunpack.c.l.b16 %v258
    %v291 = vunpack.c.l.b16 %v259
    %v292 = vunpack.c.l.b16 %v260
    %v293 = vunpack.c.l.b16 %v261
    %v294 = vunpack.c.l.b16 %v262
    %v295 = vunpack.c.l.b16 %v263
    %v296 = vunpack.c.l.b16 %v264
    %v297 = vunpack.c.l.b16 %v265
    %v298 = vunpack.c.l.b16 %v266
    %v299 = vpack.c.b16 %v284, %v283
    %v300 = vpack.c.b16 %v286, %v285
    %v301 = vpack.c.b16 %v288, %v287
    %v302 = vpack.c.b16 %v290, %v289
    %v303 = vpack.c.b16 %v292, %v291
    %v304 = vpack.c.b16 %v294, %v293
    %v305 = vpack.c.b16 %v296, %v295
    %v306 = vpack.c.b16 %v298, %v297
    %315 = vmatpush.bf16.msra.mxu0 %v306
    %316 = vmatpush.bf16.msra.mxu0 %v305
    %317 = vmatpush.bf16.msra.mxu0 %v304
    %318 = vmatpush.bf16.msra.mxu0 %v303
    %319 = vmatpush.bf16.msra.mxu0 %v302
    %320 = vmatpush.bf16.msra.mxu0 %v301
    %321 = vmatpush.bf16.msra.mxu0 %v300
    %322 = vmatpush.bf16.msra.mxu0 %v299
    %323 = vmatmul.bf16.gmra.mxu0 %v250
    %v324 = vpop.f32.mrf.mxu0
    %v325 = vadd.f32 %v246, %v324
    %v326 = vpop.f32.mrf.mxu0
    %v327 = vadd.f32 %v248, %v326
    %328 = vdwg.mxu0
    %329 = vst [vmem:[%s6] sm:$0xff] %v325
    %330 = vst [vmem:[%s6 + $0x8] sm:$0xff] %v327
    // Predicated region
    $region38: #{_forward.1} parent=1 // pred_check
      _
    $region39: #{_forward.1} parent=1 // pred_check_branch
      %332 = sbr.rel (0) target = $region41
    $region40: #{_forward.1} parent=1 // pred_region
      _
    $region41: #{_forward.1} parent=1 // pred_fallthru
      _
    // Predicated region
    $region42: #{_forward.1} parent=1 // pred_check
      _
    $region43: #{_forward.1} parent=1 // pred_check_branch
      %334 = sbr.rel (0) target = $region45
    $region44: #{_forward.1} parent=1 // pred_region
      _
    $region45: #{_forward.1} parent=1 // pred_fallthru
      _
    %335 = vsyncpa [#allocation3], 1
    %336 = vsyncpa [#allocation5], 1

</llo_original>
